<compile_context>
chip_gen: v7x
topology: tpu7x:2x2x1
jax: 0.10.0
libtpu: 0.0.40
codegen_flags: <defaults>
</compile_context>

<pallas_src>
import functools

import jax
import jax.numpy as jnp
from jax import lax
from jax.experimental import pallas as pl
from jax.experimental.pallas import tpu as pltpu


def _focal_loss_kernel(logits_ref, targets_ref, out_ref, *, epsilon, gamma,
                       num_classes, batch_size, tile_b, ragged):
    i = pl.program_id(0)
    x = logits_ref[...].astype(jnp.float32)              # (TB, C)
    t = targets_ref[...]                                  # (TB, 1) int32
    tb, c = x.shape

    # Numerically stable log-softmax; reuse the exponentials for pp.
    m = jnp.max(x, axis=1, keepdims=True)                 # (TB, 1)
    xm = x - m                                             # (TB, C)
    e = jnp.exp(xm)                                        # (TB, C)  only exp
    s = jnp.sum(e, axis=1, keepdims=True)                  # (TB, 1)
    inv_s = 1.0 / s                                        # (TB, 1) exact
    nll = jnp.log(s) - xm                                  # (TB, C) = -log_probs
    pp = e * inv_s                                         # (TB, C) softmax probs

    # One-hot mask via iota compare (scatter_ equivalent), kept as bool.
    class_ids = lax.broadcasted_iota(jnp.int32, (tb, c), 1)
    is_target = class_ids == t                             # (TB, C) bool

    # pt = pp*onehot + (1-pp)*(1-onehot)  =>  1-pt = where(onehot, 1-pp, pp)
    one_minus_pt = jnp.where(is_target, 1.0 - pp, pp)

    # (1 - pt) ** gamma : small integer gamma -> VPU multiplies, else fallback.
    g = float(gamma)
    if g == 0.0:
        w = jnp.ones_like(one_minus_pt)
    elif g.is_integer() and 1.0 <= g <= 4.0:
        w = one_minus_pt
        for _ in range(int(g) - 1):
            w = w * one_minus_pt
    else:
        w = one_minus_pt ** g

    # Fold label smoothing into the reduction:
    #   sum_c focal = (eps/K) * sum_c(w*nll) + (1-eps) * (w*nll)[target]
    wn = w * nll                                           # (TB, C)
    sum_all = jnp.sum(wn, axis=1, keepdims=True)           # (TB, 1)
    sum_tgt = jnp.sum(jnp.where(is_target, wn, 0.0),
                      axis=1, keepdims=True)               # (TB, 1)
    row_sum = (epsilon / num_classes) * sum_all + (1.0 - epsilon) * sum_tgt

    if ragged:
        # Zero rows of the padded last tile; garbage in padded rows never
        # leaks into valid rows (all ops above are row-local).
        row_ids = i * tile_b + lax.broadcasted_iota(jnp.int32, (tb, 1), 0)
        row_sum = jnp.where(row_ids < batch_size, row_sum, 0.0)

    out_ref[...] = jnp.sum(row_sum, axis=0, keepdims=True)    # (1, 1) partial


def focal_loss_label_smooth(logits, targets, *, num_classes, epsilon=0.1,
                            gamma=2.0, tile_b=None):
    """Pallas TPU focal loss with label smoothing.

    Args:
      logits:  (B, C) float array (pre-softmax scores).
      targets: (B,)   int class indices.
      tile_b:  optional batch-tile size override (multiple of 8).
    Returns:
      scalar f32 loss.
    """
    b, c = logits.shape
    assert c == num_classes
    targets2d = targets.astype(jnp.int32).reshape(b, 1)

    if tile_b is None:
        # ~4 MiB per logits buffer (Pallas double-buffers), comfortably under
        # the scoped-VMEM defaults on v5e/v6e/v7x while keeping tiles large
        # enough to amortize the ~0.35 us per-grid-step overhead.
        budget = 4 * 1024 * 1024
        max_tb = max(8, (budget // (c * 4)) // 8 * 8)
        tile_b = min(-(-b // 8) * 8, max_tb)
    tile_b = int(tile_b)

    grid_b = pl.cdiv(b, tile_b)
    ragged = (b % tile_b) != 0

    kernel = functools.partial(
        _focal_loss_kernel,
        epsilon=float(epsilon),
        gamma=float(gamma),
        num_classes=int(num_classes),
        batch_size=int(b),
        tile_b=tile_b,
        ragged=ragged,
    )

    partials = pl.pallas_call(
        kernel,
        out_shape=jax.ShapeDtypeStruct((grid_b, 1), jnp.float32),
        grid_spec=pltpu.PrefetchScalarGridSpec(
            num_scalar_prefetch=0,
            grid=(grid_b,),
            in_specs=[
                pl.BlockSpec((tile_b, c), lambda i: (i, 0)),
                pl.BlockSpec((tile_b, 1), lambda i: (i, 0)),
            ],
            out_specs=pl.BlockSpec((1, 1), lambda i: (i, 0)),
        ),
        compiler_params=pltpu.CompilerParams(
            dimension_semantics=("parallel",),
            vmem_limit_bytes=32 * 1024 * 1024,
        ),
    )(logits, targets2d)

    # Tiny final reduction + division by the *full* batch in plain JAX.
    return jnp.sum(partials) / b


def _reference(logits, targets, *, num_classes, epsilon, gamma):
    x = logits.astype(jnp.float32)
    log_probs = jax.nn.log_softmax(x, axis=1)
    onehot = jax.nn.one_hot(targets, num_classes, dtype=jnp.float32)
    pp = jnp.exp(log_probs)
    pt = pp * onehot + (1.0 - pp) * (1.0 - onehot)
    smoothed = (1.0 - epsilon) * onehot + epsilon / num_classes
    focal = -((1.0 - pt) ** gamma) * log_probs * smoothed
    return focal.mean(0).sum()


if __name__ == "__main__":
    NUM_CLASSES = 32
    EPSILON = 0.1
    GAMMA = 2.0

    key = jax.random.PRNGKey(0)

    # Case 1: small aligned batch, single tile (mask compiled out).
    B1 = 8
    k1, k2, k3, k4 = jax.random.split(key, 4)
    logits1 = jax.random.normal(k1, (B1, NUM_CLASSES), dtype=jnp.float32)
    targets1 = jax.random.randint(k2, (B1,), 0, NUM_CLASSES, dtype=jnp.int32)

    loss1 = focal_loss_label_smooth(
        logits1, targets1, num_classes=NUM_CLASSES, epsilon=EPSILON,
        gamma=GAMMA)
    loss1 = jax.block_until_ready(loss1)
    ref1 = _reference(logits1, targets1, num_classes=NUM_CLASSES,
                      epsilon=EPSILON, gamma=GAMMA)
    assert jnp.allclose(loss1, ref1, atol=1e-5, rtol=1e-5), (loss1, ref1)

    # Case 2: multi-tile grid with a ragged last tile (exercises the
    # row-sum masking and the parallel partial-sum path).
    B2 = 20
    logits2 = jax.random.normal(k3, (B2, NUM_CLASSES), dtype=jnp.float32)
    targets2 = jax.random.randint(k4, (B2,), 0, NUM_CLASSES, dtype=jnp.int32)

    loss2 = focal_loss_label_smooth(
        logits2, targets2, num_classes=NUM_CLASSES, epsilon=EPSILON,
        gamma=GAMMA, tile_b=8)
    loss2 = jax.block_until_ready(loss2)
    ref2 = _reference(logits2, targets2, num_classes=NUM_CLASSES,
                      epsilon=EPSILON, gamma=GAMMA)
    assert jnp.allclose(loss2, ref2, atol=1e-5, rtol=1e-5), (loss2, ref2)

    print("KERNEL_OK")
</pallas_src>

<mosaic_0001>
module attributes {stable_mosaic.version = 11 : i64} {
  func.func @_focal_loss_kernel(%arg0: i32, %arg1: memref<8x32xf32, #tpu.memory_space<vmem>>, %arg2: memref<8x1xi32, #tpu.memory_space<vmem>>, %arg3: memref<1x1xf32, #tpu.memory_space<vmem>>) attributes {dimension_semantics = [#tpu.dimension_semantics<parallel>], iteration_bounds = array<i64: 1>, scalar_prefetch = 0 : i64, scratch_operands = 0 : i64, tpu.core_type = #tpu.core_type<tc>, window_params = [{transform_indices = @transform_0, window_bounds = array<i64: 8, 32>}, {transform_indices = @transform_1, window_bounds = array<i64: 8, 1>}, {transform_indices = @transform_2, window_bounds = array<i64: 1, 1>}]} {
    %c0 = arith.constant 0 : index
    %c0_0 = arith.constant 0 : index
    %0 = vector.load %arg1[%c0, %c0_0] : memref<8x32xf32, #tpu.memory_space<vmem>>, vector<8x32xf32>
    %c0_1 = arith.constant 0 : index
    %c0_2 = arith.constant 0 : index
    %1 = vector.load %arg2[%c0_1, %c0_2] : memref<8x1xi32, #tpu.memory_space<vmem>>, vector<8x1xi32>
    %cst = arith.constant dense<0xFF800000> : vector<8xf32>
    %2 = vector.multi_reduction <maximumf>, %0, %cst [1] : vector<8x32xf32> to vector<8xf32>
    %3 = vector.shape_cast %2 : vector<8xf32> to vector<8x1xf32>
    %4 = vector.broadcast %3 : vector<8x1xf32> to vector<8x32xf32>
    %5 = arith.subf %0, %4 : vector<8x32xf32>
    %6 = math.exp %5 : vector<8x32xf32>
    %cst_3 = arith.constant dense<0.000000e+00> : vector<8xf32>
    %7 = vector.multi_reduction <add>, %6, %cst_3 [1] : vector<8x32xf32> to vector<8xf32>
    %8 = vector.shape_cast %7 : vector<8xf32> to vector<8x1xf32>
    %cst_4 = arith.constant 1.000000e+00 : f32
    %9 = vector.broadcast %cst_4 : f32 to vector<8x1xf32>
    %10 = arith.divf %9, %8 : vector<8x1xf32>
    %11 = math.log %8 : vector<8x1xf32>
    %12 = vector.broadcast %11 : vector<8x1xf32> to vector<8x32xf32>
    %13 = arith.subf %12, %5 : vector<8x32xf32>
    %14 = vector.broadcast %10 : vector<8x1xf32> to vector<8x32xf32>
    %15 = arith.mulf %6, %14 : vector<8x32xf32>
    %16 = tpu.iota {dimensions = array<i32: 1>} : vector<8x32xi32>
    %17 = vector.broadcast %1 : vector<8x1xi32> to vector<8x32xi32>
    %18 = arith.cmpi eq, %16, %17 : vector<8x32xi32>
    %cst_5 = arith.constant 1.000000e+00 : f32
    %19 = vector.broadcast %cst_5 : f32 to vector<8x32xf32>
    %20 = arith.subf %19, %15 : vector<8x32xf32>
    %21 = arith.select %18, %20, %15 : vector<8x32xi1>, vector<8x32xf32>
    %22 = arith.mulf %21, %21 : vector<8x32xf32>
    %23 = arith.mulf %22, %13 : vector<8x32xf32>
    %cst_6 = arith.constant dense<0.000000e+00> : vector<8xf32>
    %24 = vector.multi_reduction <add>, %23, %cst_6 [1] : vector<8x32xf32> to vector<8xf32>
    %25 = vector.shape_cast %24 : vector<8xf32> to vector<8x1xf32>
    %cst_7 = arith.constant 0.000000e+00 : f32
    %26 = vector.broadcast %cst_7 : f32 to vector<8x32xf32>
    %27 = arith.select %18, %23, %26 : vector<8x32xi1>, vector<8x32xf32>
    %cst_8 = arith.constant dense<0.000000e+00> : vector<8xf32>
    %28 = vector.multi_reduction <add>, %27, %cst_8 [1] : vector<8x32xf32> to vector<8xf32>
    %29 = vector.shape_cast %28 : vector<8xf32> to vector<8x1xf32>
    %cst_9 = arith.constant 3.125000e-03 : f32
    %30 = vector.broadcast %cst_9 : f32 to vector<8x1xf32>
    %31 = arith.mulf %30, %25 : vector<8x1xf32>
    %cst_10 = arith.constant 0.899999976 : f32
    %32 = vector.broadcast %cst_10 : f32 to vector<8x1xf32>
    %33 = arith.mulf %32, %29 : vector<8x1xf32>
    %34 = arith.addf %31, %33 : vector<8x1xf32>
    %cst_11 = arith.constant dense<0.000000e+00> : vector<1xf32>
    %35 = vector.multi_reduction <add>, %34, %cst_11 [0] : vector<8x1xf32> to vector<1xf32>
    %36 = vector.shape_cast %35 : vector<1xf32> to vector<1x1xf32>
    %c0_12 = arith.constant 0 : index
    %c0_13 = arith.constant 0 : index
    %37 = vector.load %arg3[%c0_12, %c0_13] : memref<1x1xf32, #tpu.memory_space<vmem>>, vector<1x1xf32>
    tpu.vector_store %arg3[%c0_12, %c0_13], %36 {strides = array<i32>} : memref<1x1xf32, #tpu.memory_space<vmem>>, vector<1x1xf32>,
    return
  }
  func.func @transform_0(%arg0: i32) -> (i32, i32) {
    %c0_i32 = arith.constant 0 : i32
    %c0_i32_0 = arith.constant 0 : i32
    return %arg0, %c0_i32 : i32, i32
  }
  func.func @transform_1(%arg0: i32) -> (i32, i32) {
    %c0_i32 = arith.constant 0 : i32
    %c0_i32_0 = arith.constant 0 : i32
    return %arg0, %c0_i32 : i32, i32
  }
  func.func @transform_2(%arg0: i32) -> (i32, i32) {
    %c0_i32 = arith.constant 0 : i32
    %c0_i32_0 = arith.constant 0 : i32
    return %arg0, %c0_i32 : i32, i32
  }
}

</mosaic_0001>

<llo_original>
// kernel: tpu_custom_call.1
$region0: #{tpu_custom_call.1}
  #allocation0 [shape = 'u32[]', space=smem, size = 0x4, offset = 0x4, fixed_abs, tag = 'smem constant byte address 0x4 - core index']
  #allocation1 [shape = 'u32[144,128]{1,0:T(1,128)}', space=vmem, size = 0x12000, scoped, tag = 'internal scratch']
  %s0 = inlined_call_operand.vmem [shape: f32[8,32], index: 0, kind: input, shape index: {}]
  %s1 = inlined_call_operand.vmem [shape: s32[8,1], index: 1, kind: input, shape index: {}]
  %s2 = inlined_call_operand.hbm [shape: f32[1,1], index: 2, kind: output, shape index: {}]
  %s3 = sld [smem:[#allocation0]]
  $region18: #{tpu_custom_call.1} parent=0
    _
  %s5 = ssub.s32 1, %s3
  %s6 = scalar_select 0, %s5, %s3
  $region1: #{tpu_custom_call.1} parent=0
    #allocation2 [shape = 'u8[512]{0}', space=vmem, size = 0x400, scoped, tag = 'output window, operand 0, single buffered']
    #allocation3 [shape = 's32[1]{0}', space=sflag, size = 0x4, scoped, tag = 'scoped memory for tpu_custom_call.1']
    %7 = vsyncpa [#allocation3], 0
    // Predicated region
    $region2: #{tpu_custom_call.1} parent=1 // pred_check
      _
    $region3: #{tpu_custom_call.1} parent=1 // pred_check_branch
      %9 = sbr.rel (0) target = $region5
    $region4: #{tpu_custom_call.1} parent=1 // pred_region
      _
    $region5: #{tpu_custom_call.1} parent=1 // pred_fallthru
      _
    // Predicated region
    $region6: #{tpu_custom_call.1} parent=1 // pred_check
      _
    $region7: #{tpu_custom_call.1} parent=1 // pred_check_branch
      %11 = sbr.rel (0) target = $region9
    $region8: #{tpu_custom_call.1} parent=1 // pred_region
      _
    $region9: #{tpu_custom_call.1} parent=1 // pred_fallthru
      _
    %v12 = vld [vmem:[%s0] sm:$0xff]
    %v13 = vld [vmem:[%s1] sm:$0xff]
    %vm14 = vcmask 261120
    %v15 = vsel %vm14, %v12, -inf
    %16 = vmax.xlane.f32.xlu0 %v15
    %v17 = vpop.xlane.xlu0 %16
    %v18 = vsub.f32 %v12, %v17
    %v19 = vmul.f32 %v18, 1.442695
    %v20 = vpow.pop %v19
    %v21 = vsel %vm14, %v20, 0.0
    %22 = vadd.xlane.f32.xlu0 %v21
    %v23 = vpop.xlane.xlu0 %22
    %v24 = vrcp.pop %v23
    %v25 = vmul.f32 1.0, %v24
    %v26 = vlog2.pop %v23
    %v27 = vmul.f32 %v26, 0.6931472
    %v28 = vsub.f32 %v27, %v18
    %v29 = vmul.f32 %v20, %v25
    %v30 = vlaneseq
    %v31 = vand.u32 %v30, 127
    %32 = vset.pattern.permute.xlu0 0
    %33 = vperm.xlu0 %32, %v13
    %v34 = vpop.permute.xlu0 %33
    %vm35 = vcmp.eq.s32.totalorder %v31, %v34
    %v36 = vsub.f32 1.0, %v29
    %v37 = vsel %vm35, %v36, %v29
    %v38 = vmul.f32 %v37, %v37
    %v39 = vmul.f32 %v38, %v28
    %v40 = vsel %vm14, %v39, 0.0
    %41 = vadd.xlane.f32.xlu0 %v40
    %v42 = vpop.xlane.xlu0 %41
    %v43 = vsel %vm35, %v39, 0.0
    %v44 = vsel %vm14, %v43, 0.0
    %45 = vadd.xlane.f32.xlu0 %v44
    %v46 = vpop.xlane.xlu0 %45
    %v47 = vmul.f32 %v42, 0.003125
    %v48 = vmul.f32 %v46, 0.9
    %v49 = vadd.f32 %v47, %v48
    %v50 = vrot.slane %v49, 4
    %v51 = vadd.f32 %v49, %v50
    %v52 = vrot.slane %v51, 2
    %v53 = vadd.f32 %v51, %v52
    %v54 = vrot.slane %v53, 1
    %v55 = vadd.f32 %v53, %v54
    %vm56 = vcmask 0
    %57 = vst.msk [vmem:[#allocation2] sm:$0x1] %vm56, %v55
    // Predicated region
    $region10: #{tpu_custom_call.1} parent=1 // pred_check
      _
    $region11: #{tpu_custom_call.1} parent=1 // pred_check_branch
      %59 = sbr.rel (0) target = $region13
    $region12: #{tpu_custom_call.1} parent=1 // pred_region
      %s61 = ssub.s32 16, 16
      %62 = vsyncadd [#allocation3], %s61
      %s64 = sshll.u32 [#allocation2], 4
      %s65 = int_to_ptr.vmem [resolvable:$true] %s64
      %67 = dma.vmem_to_hbm [thread:$0]  %s65, 16, %s2, [#allocation3]
    $region13: #{tpu_custom_call.1} parent=1 // pred_fallthru
      _
    // Predicated region
    $region14: #{tpu_custom_call.1} parent=1 // pred_check
      _
    $region15: #{tpu_custom_call.1} parent=1 // pred_check_branch
      %69 = sbr.rel (0) target = $region17
    $region16: #{tpu_custom_call.1} parent=1 // pred_region
      %70 = dma.done [#allocation3], 16
    $region17: #{tpu_custom_call.1} parent=1 // pred_fallthru
      _
    %71 = vsyncpa [#allocation3], 1

</llo_original>
